<compile_context>
chip_gen: v5e
topology: v5e:2x2
jax: 0.10.0
libtpu: 0.0.40
codegen_flags: <defaults>
</compile_context>

<pallas_src>
import functools

import jax
import jax.numpy as jnp
from jax.experimental import pallas as pl
from jax.experimental.pallas import tpu as pltpu

_SMOOTH = 1e-05
_LANE = 128
_SUBLANE_GRAN = 32            # lcm of native sublane tiles: f32(8), bf16(16), int8(32)
_TARGET_BLOCK_BYTES = 1 << 20  # ~1 MiB of (scores + labels) per grid step
_MAX_TM = 2048


def _round_up(x, m):
    return ((x + m - 1) // m) * m


def _dice_partial_kernel(x_ref, t_ref, out_ref, *, n_classes):
    # x_ref  : (1, C, TM, 128)  score tile (bf16 or f32)
    # t_ref  : (1, 1, TM, 128)  integer labels (int8/int32), padding == -1
    # out_ref: (1, 3*C, 128)    f32 partial sums, resident across the spatial axis
    s = pl.program_id(1)

    @pl.when(s == 0)
    def _init():
        out_ref[...] = jnp.zeros_like(out_ref)

    labels = t_ref[0, 0].astype(jnp.int32)                 # (TM, 128)

    rows = []
    for c in range(n_classes):                             # static unroll; C is small
        score = x_ref[0, c].astype(jnp.float32)            # (TM, 128), upcast in-kernel
        mask = labels == c
        # one-hot target => tgt*tgt == tgt, so y_sum is a mask popcount.
        isec = jnp.sum(jnp.where(mask, score, 0.0), axis=0, keepdims=True)  # (1,128)
        ysum = jnp.sum(mask.astype(jnp.float32), axis=0, keepdims=True)     # (1,128)
        zsum = jnp.sum(score * score, axis=0, keepdims=True)                # (1,128)
        rows += [isec, ysum, zsum]

    out_ref[0] = out_ref[0] + jnp.concatenate(rows, axis=0)  # (3*C, 128)


def dice_loss_2(inputs, target, weight=None, softmax=False,
                score_dtype=jnp.bfloat16):
    """Pallas implementation of DiceLoss_2.forward.

    inputs: [B, C, H, W] float scores (probabilities if softmax=False, logits
            if softmax=True — matches the PyTorch module semantics).
    target: [B, H, W] integer class labels.
    score_dtype: dtype of the score stream fed to the kernel.  bfloat16 halves
            HBM traffic on the mem-bound v5e/v6e; pass jnp.float32 for
            bit-level parity with the original f32 module.
    Returns a scalar float32 loss.
    """
    B, C, H, W = inputs.shape
    if softmax:
        inputs = jax.nn.softmax(inputs.astype(jnp.float32), axis=1)
    if weight is None:
        weight = jnp.ones((C,), jnp.float32)
    else:
        weight = jnp.asarray(weight, jnp.float32)

    label_dtype = jnp.int8 if C <= 127 else jnp.int32      # int8 valid while C < 128

    # --- spatial tiling: pick TM (sublanes per tile) so each step is ~1 MiB ---
    N = H * W
    score_bytes = jnp.dtype(score_dtype).itemsize
    label_bytes = jnp.dtype(label_dtype).itemsize
    bytes_per_sublane = _LANE * (C * score_bytes + label_bytes)
    tm_cap = (_TARGET_BLOCK_BYTES // bytes_per_sublane) // _SUBLANE_GRAN * _SUBLANE_GRAN
    tm_cap = max(_SUBLANE_GRAN, min(_MAX_TM, tm_cap))

    mh_min = _round_up((N + _LANE - 1) // _LANE, _SUBLANE_GRAN)
    if mh_min <= tm_cap:
        tm, n_tiles = mh_min, 1
    else:
        tm = tm_cap
        n_tiles = (mh_min + tm - 1) // tm
    mh = n_tiles * tm
    n_pad = mh * _LANE

    # --- layout glue: contiguous reshape only, no transpose ---
    x = inputs.reshape(B, C, N).astype(score_dtype)
    t = target.reshape(B, 1, N).astype(label_dtype)
    if n_pad != N:
        x = jnp.pad(x, ((0, 0), (0, 0), (0, n_pad - N)))
        # -1 never matches a valid class -> padding contributes 0 to every sum.
        t = jnp.pad(t, ((0, 0), (0, 0), (0, n_pad - N)), constant_values=-1)
    x = x.reshape(B, C, mh, _LANE)
    t = t.reshape(B, 1, mh, _LANE)

    kernel = functools.partial(_dice_partial_kernel, n_classes=C)
    partial = pl.pallas_call(
        kernel,
        out_shape=jax.ShapeDtypeStruct((B, 3 * C, _LANE), jnp.float32),
        grid=(B, n_tiles),
        in_specs=[
            pl.BlockSpec((1, C, tm, _LANE), lambda b, s: (b, 0, s, 0)),  # scores
            pl.BlockSpec((1, 1, tm, _LANE), lambda b, s: (b, 0, s, 0)),  # labels
        ],
        out_specs=pl.BlockSpec((1, 3 * C, _LANE), lambda b, s: (b, 0, 0)),
        compiler_params=pltpu.CompilerParams(
            dimension_semantics=("parallel", "arbitrary"),
        ),
    )(x, t)

    # Tiny XLA epilogue: finish batch + lane reductions, dice formula, weighted mean.
    sums = partial.reshape(B, C, 3, _LANE).sum(axis=(0, 3))      # (C, 3)
    intersect, y_sum, z_sum = sums[:, 0], sums[:, 1], sums[:, 2]
    dice = 1.0 - (2.0 * intersect + _SMOOTH) / (z_sum + y_sum + _SMOOTH)
    return jnp.sum(dice * weight) / C


def _reference_dice_loss(inputs, target, n_classes, weight=None, softmax=False):
    """Pure-JAX re-implementation of the PyTorch forward, for verification."""
    if softmax:
        inputs = jax.nn.softmax(inputs, axis=1)
    if weight is None:
        weight = [1.0] * n_classes
    loss = 0.0
    for i in range(n_classes):
        score = inputs[:, i].astype(jnp.float32)
        tgt = (target == i).astype(jnp.float32)
        intersect = jnp.sum(score * tgt)
        y_sum = jnp.sum(tgt * tgt)
        z_sum = jnp.sum(score * score)
        dice = 1.0 - (2.0 * intersect + _SMOOTH) / (z_sum + y_sum + _SMOOTH)
        loss = loss + dice * weight[i]
    return loss / n_classes


if __name__ == "__main__":
    key = jax.random.PRNGKey(0)
    B, C, H, W = 2, 4, 16, 16
    k1, k2 = jax.random.split(key)

    logits = jax.random.normal(k1, (B, C, H, W), dtype=jnp.float32)
    probs = jax.nn.softmax(logits, axis=1)
    target = jax.random.randint(k2, (B, H, W), 0, C, dtype=jnp.int32)

    # Default path: bf16 score stream (perf choice for the mem-bound kernel).
    loss_bf16 = jax.block_until_ready(dice_loss_2(probs, target))
    # Exact-f32 path (matches the original module's arithmetic).
    loss_f32 = jax.block_until_ready(
        dice_loss_2(probs, target, score_dtype=jnp.float32))

    ref_f32 = jax.block_until_ready(_reference_dice_loss(probs, target, C))
    ref_bf16 = jax.block_until_ready(
        _reference_dice_loss(
            probs.astype(jnp.bfloat16).astype(jnp.float32), target, C))

    assert jnp.isfinite(loss_bf16) and jnp.isfinite(loss_f32)
    # Kernel math checks (same input quantization -> tight tolerance).
    assert abs(float(loss_f32) - float(ref_f32)) < 1e-5, (float(loss_f32), float(ref_f32))
    assert abs(float(loss_bf16) - float(ref_bf16)) < 5e-5, (float(loss_bf16), float(ref_bf16))
    # bf16 score stream stays close to full-f32 module semantics.
    assert abs(float(loss_bf16) - float(ref_f32)) < 5e-3, (float(loss_bf16), float(ref_f32))

    # Weighted + softmax=True path.
    w = [0.5, 1.0, 1.5, 2.0]
    loss_w = jax.block_until_ready(
        dice_loss_2(logits, target, weight=w, softmax=True, score_dtype=jnp.float32))
    ref_w = jax.block_until_ready(
        _reference_dice_loss(logits, target, C, weight=w, softmax=True))
    assert abs(float(loss_w) - float(ref_w)) < 1e-5, (float(loss_w), float(ref_w))

    print("KERNEL_OK")
</pallas_src>

<mosaic_0001>
module attributes {stable_mosaic.version = 11 : i64} {
  func.func @_dice_partial_kernel(%arg0: i32, %arg1: i32, %arg2: memref<1x4x32x128xbf16, #tpu.memory_space<vmem>>, %arg3: memref<1x1x32x128xi8, #tpu.memory_space<vmem>>, %arg4: memref<1x12x128xf32, #tpu.memory_space<vmem>>) attributes {dimension_semantics = [#tpu.dimension_semantics<parallel>, #tpu.dimension_semantics<arbitrary>], iteration_bounds = array<i64: 2, 1>, scalar_prefetch = 0 : i64, scratch_operands = 0 : i64, tpu.core_type = #tpu.core_type<tc>, window_params = [{transform_indices = @transform_0, window_bounds = array<i64: 1, 4, 32, 128>}, {transform_indices = @transform_1, window_bounds = array<i64: 1, 1, 32, 128>}, {transform_indices = @transform_2, window_bounds = array<i64: 1, 12, 128>}]} {
    %c0_i32 = arith.constant 0 : i32
    %0 = arith.cmpi eq, %arg1, %c0_i32 : i32
    %1 = arith.extui %0 : i1 to i32
    %c0_i32_0 = arith.constant 0 : i32
    %2 = arith.cmpi ne, %1, %c0_i32_0 : i32
    scf.if %2 {
      %cst_39 = arith.constant 0.000000e+00 : f32
      %77 = vector.broadcast %cst_39 : f32 to vector<1x12x128xf32>
      %c0_40 = arith.constant 0 : index
      %c0_41 = arith.constant 0 : index
      %c0_42 = arith.constant 0 : index
      %78 = vector.load %arg4[%c0_40, %c0_41, %c0_42] : memref<1x12x128xf32, #tpu.memory_space<vmem>>, vector<1x12x128xf32>
      tpu.vector_store %arg4[%c0_40, %c0_41, %c0_42], %77 {strides = array<i32>} : memref<1x12x128xf32, #tpu.memory_space<vmem>>, vector<1x12x128xf32>,
    } else {
    }
    %c0 = arith.constant 0 : index
    %c0_1 = arith.constant 0 : index
    %c0_2 = arith.constant 0 : index
    %c0_3 = arith.constant 0 : index
    %3 = vector.load %arg3[%c0, %c0_1, %c0_2, %c0_3] : memref<1x1x32x128xi8, #tpu.memory_space<vmem>>, vector<1x1x32x128xi8>
    %4 = vector.shape_cast %3 : vector<1x1x32x128xi8> to vector<32x128xi8>
    %5 = arith.extsi %4 : vector<32x128xi8> to vector<32x128xi32>
    %c0_4 = arith.constant 0 : index
    %c0_5 = arith.constant 0 : index
    %c0_6 = arith.constant 0 : index
    %c0_7 = arith.constant 0 : index
    %6 = vector.load %arg2[%c0_4, %c0_5, %c0_6, %c0_7] : memref<1x4x32x128xbf16, #tpu.memory_space<vmem>>, vector<1x1x32x128xbf16>
    %7 = vector.shape_cast %6 : vector<1x1x32x128xbf16> to vector<32x128xbf16>
    %8 = arith.extf %7 : vector<32x128xbf16> to vector<32x128xf32>
    %c0_i32_8 = arith.constant 0 : i32
    %9 = vector.broadcast %c0_i32_8 : i32 to vector<32x128xi32>
    %10 = arith.cmpi eq, %5, %9 : vector<32x128xi32>
    %cst = arith.constant 0.000000e+00 : f32
    %11 = vector.broadcast %cst : f32 to vector<32x128xf32>
    %12 = arith.select %10, %8, %11 : vector<32x128xi1>, vector<32x128xf32>
    %cst_9 = arith.constant dense<0.000000e+00> : vector<128xf32>
    %13 = vector.multi_reduction <add>, %12, %cst_9 [0] : vector<32x128xf32> to vector<128xf32>
    %14 = vector.shape_cast %13 : vector<128xf32> to vector<1x128xf32>
    %15 = arith.extui %10 : vector<32x128xi1> to vector<32x128xi32>
    %16 = arith.sitofp %15 : vector<32x128xi32> to vector<32x128xf32>
    %cst_10 = arith.constant dense<0.000000e+00> : vector<128xf32>
    %17 = vector.multi_reduction <add>, %16, %cst_10 [0] : vector<32x128xf32> to vector<128xf32>
    %18 = vector.shape_cast %17 : vector<128xf32> to vector<1x128xf32>
    %19 = arith.mulf %8, %8 : vector<32x128xf32>
    %cst_11 = arith.constant dense<0.000000e+00> : vector<128xf32>
    %20 = vector.multi_reduction <add>, %19, %cst_11 [0] : vector<32x128xf32> to vector<128xf32>
    %21 = vector.shape_cast %20 : vector<128xf32> to vector<1x128xf32>
    %c0_12 = arith.constant 0 : index
    %c1 = arith.constant 1 : index
    %c0_13 = arith.constant 0 : index
    %c0_14 = arith.constant 0 : index
    %22 = vector.load %arg2[%c0_12, %c1, %c0_13, %c0_14] : memref<1x4x32x128xbf16, #tpu.memory_space<vmem>>, vector<1x1x32x128xbf16>
    %23 = vector.shape_cast %22 : vector<1x1x32x128xbf16> to vector<32x128xbf16>
    %24 = arith.extf %23 : vector<32x128xbf16> to vector<32x128xf32>
    %c1_i32 = arith.constant 1 : i32
    %25 = vector.broadcast %c1_i32 : i32 to vector<32x128xi32>
    %26 = arith.cmpi eq, %5, %25 : vector<32x128xi32>
    %cst_15 = arith.constant 0.000000e+00 : f32
    %27 = vector.broadcast %cst_15 : f32 to vector<32x128xf32>
    %28 = arith.select %26, %24, %27 : vector<32x128xi1>, vector<32x128xf32>
    %cst_16 = arith.constant dense<0.000000e+00> : vector<128xf32>
    %29 = vector.multi_reduction <add>, %28, %cst_16 [0] : vector<32x128xf32> to vector<128xf32>
    %30 = vector.shape_cast %29 : vector<128xf32> to vector<1x128xf32>
    %31 = arith.extui %26 : vector<32x128xi1> to vector<32x128xi32>
    %32 = arith.sitofp %31 : vector<32x128xi32> to vector<32x128xf32>
    %cst_17 = arith.constant dense<0.000000e+00> : vector<128xf32>
    %33 = vector.multi_reduction <add>, %32, %cst_17 [0] : vector<32x128xf32> to vector<128xf32>
    %34 = vector.shape_cast %33 : vector<128xf32> to vector<1x128xf32>
    %35 = arith.mulf %24, %24 : vector<32x128xf32>
    %cst_18 = arith.constant dense<0.000000e+00> : vector<128xf32>
    %36 = vector.multi_reduction <add>, %35, %cst_18 [0] : vector<32x128xf32> to vector<128xf32>
    %37 = vector.shape_cast %36 : vector<128xf32> to vector<1x128xf32>
    %c0_19 = arith.constant 0 : index
    %c2 = arith.constant 2 : index
    %c0_20 = arith.constant 0 : index
    %c0_21 = arith.constant 0 : index
    %38 = vector.load %arg2[%c0_19, %c2, %c0_20, %c0_21] : memref<1x4x32x128xbf16, #tpu.memory_space<vmem>>, vector<1x1x32x128xbf16>
    %39 = vector.shape_cast %38 : vector<1x1x32x128xbf16> to vector<32x128xbf16>
    %40 = arith.extf %39 : vector<32x128xbf16> to vector<32x128xf32>
    %c2_i32 = arith.constant 2 : i32
    %41 = vector.broadcast %c2_i32 : i32 to vector<32x128xi32>
    %42 = arith.cmpi eq, %5, %41 : vector<32x128xi32>
    %cst_22 = arith.constant 0.000000e+00 : f32
    %43 = vector.broadcast %cst_22 : f32 to vector<32x128xf32>
    %44 = arith.select %42, %40, %43 : vector<32x128xi1>, vector<32x128xf32>
    %cst_23 = arith.constant dense<0.000000e+00> : vector<128xf32>
    %45 = vector.multi_reduction <add>, %44, %cst_23 [0] : vector<32x128xf32> to vector<128xf32>
    %46 = vector.shape_cast %45 : vector<128xf32> to vector<1x128xf32>
    %47 = arith.extui %42 : vector<32x128xi1> to vector<32x128xi32>
    %48 = arith.sitofp %47 : vector<32x128xi32> to vector<32x128xf32>
    %cst_24 = arith.constant dense<0.000000e+00> : vector<128xf32>
    %49 = vector.multi_reduction <add>, %48, %cst_24 [0] : vector<32x128xf32> to vector<128xf32>
    %50 = vector.shape_cast %49 : vector<128xf32> to vector<1x128xf32>
    %51 = arith.mulf %40, %40 : vector<32x128xf32>
    %cst_25 = arith.constant dense<0.000000e+00> : vector<128xf32>
    %52 = vector.multi_reduction <add>, %51, %cst_25 [0] : vector<32x128xf32> to vector<128xf32>
    %53 = vector.shape_cast %52 : vector<128xf32> to vector<1x128xf32>
    %c0_26 = arith.constant 0 : index
    %c3 = arith.constant 3 : index
    %c0_27 = arith.constant 0 : index
    %c0_28 = arith.constant 0 : index
    %54 = vector.load %arg2[%c0_26, %c3, %c0_27, %c0_28] : memref<1x4x32x128xbf16, #tpu.memory_space<vmem>>, vector<1x1x32x128xbf16>
    %55 = vector.shape_cast %54 : vector<1x1x32x128xbf16> to vector<32x128xbf16>
    %56 = arith.extf %55 : vector<32x128xbf16> to vector<32x128xf32>
    %c3_i32 = arith.constant 3 : i32
    %57 = vector.broadcast %c3_i32 : i32 to vector<32x128xi32>
    %58 = arith.cmpi eq, %5, %57 : vector<32x128xi32>
    %cst_29 = arith.constant 0.000000e+00 : f32
    %59 = vector.broadcast %cst_29 : f32 to vector<32x128xf32>
    %60 = arith.select %58, %56, %59 : vector<32x128xi1>, vector<32x128xf32>
    %cst_30 = arith.constant dense<0.000000e+00> : vector<128xf32>
    %61 = vector.multi_reduction <add>, %60, %cst_30 [0] : vector<32x128xf32> to vector<128xf32>
    %62 = vector.shape_cast %61 : vector<128xf32> to vector<1x128xf32>
    %63 = arith.extui %58 : vector<32x128xi1> to vector<32x128xi32>
    %64 = arith.sitofp %63 : vector<32x128xi32> to vector<32x128xf32>
    %cst_31 = arith.constant dense<0.000000e+00> : vector<128xf32>
    %65 = vector.multi_reduction <add>, %64, %cst_31 [0] : vector<32x128xf32> to vector<128xf32>
    %66 = vector.shape_cast %65 : vector<128xf32> to vector<1x128xf32>
    %67 = arith.mulf %56, %56 : vector<32x128xf32>
    %cst_32 = arith.constant dense<0.000000e+00> : vector<128xf32>
    %68 = vector.multi_reduction <add>, %67, %cst_32 [0] : vector<32x128xf32> to vector<128xf32>
    %69 = vector.shape_cast %68 : vector<128xf32> to vector<1x128xf32>
    %c0_33 = arith.constant 0 : index
    %c0_34 = arith.constant 0 : index
    %c0_35 = arith.constant 0 : index
    %70 = vector.load %arg4[%c0_33, %c0_34, %c0_35] : memref<1x12x128xf32, #tpu.memory_space<vmem>>, vector<1x12x128xf32>
    %71 = vector.shape_cast %70 : vector<1x12x128xf32> to vector<12x128xf32>
    %72 = tpu.concatenate %14, %18, %21, %30, %34, %37, %46, %50, %53, %62, %66, %69 in 0 : vector<1x128xf32>, vector<1x128xf32>, vector<1x128xf32>, vector<1x128xf32>, vector<1x128xf32>, vector<1x128xf32>, vector<1x128xf32>, vector<1x128xf32>, vector<1x128xf32>, vector<1x128xf32>, vector<1x128xf32>, vector<1x128xf32> -> vector<12x128xf32>
    %73 = arith.addf %71, %72 : vector<12x128xf32>
    %c0_36 = arith.constant 0 : index
    %c0_37 = arith.constant 0 : index
    %c0_38 = arith.constant 0 : index
    %74 = vector.load %arg4[%c0_36, %c0_37, %c0_38] : memref<1x12x128xf32, #tpu.memory_space<vmem>>, vector<1x12x128xf32>
    %75 = vector.shape_cast %74 : vector<1x12x128xf32> to vector<12x128xf32>
    %76 = vector.shape_cast %73 : vector<12x128xf32> to vector<1x12x128xf32>
    tpu.vector_store %arg4[%c0_36, %c0_37, %c0_38], %76 {strides = array<i32>} : memref<1x12x128xf32, #tpu.memory_space<vmem>>, vector<1x12x128xf32>,
    return
  }
  func.func @transform_0(%arg0: i32, %arg1: i32) -> (i32, i32, i32, i32) {
    %c0_i32 = arith.constant 0 : i32
    %c0_i32_0 = arith.constant 0 : i32
    %c0_i32_1 = arith.constant 0 : i32
    return %arg0, %c0_i32, %arg1, %c0_i32_0 : i32, i32, i32, i32
  }
  func.func @transform_1(%arg0: i32, %arg1: i32) -> (i32, i32, i32, i32) {
    %c0_i32 = arith.constant 0 : i32
    %c0_i32_0 = arith.constant 0 : i32
    %c0_i32_1 = arith.constant 0 : i32
    return %arg0, %c0_i32, %arg1, %c0_i32_0 : i32, i32, i32, i32
  }
  func.func @transform_2(%arg0: i32, %arg1: i32) -> (i32, i32, i32) {
    %c0_i32 = arith.constant 0 : i32
    %c0_i32_0 = arith.constant 0 : i32
    %c0_i32_1 = arith.constant 0 : i32
    return %arg0, %c0_i32, %c0_i32_0 : i32, i32, i32
  }
}

</mosaic_0001>

<llo_original>
// kernel: tpu_custom_call.1
$region0: #{tpu_custom_call.1}
  #allocation0 [shape = 'u32[]', space=smem, size = 0x4, offset = 0x4, fixed_abs, tag = 'smem constant byte address 0x4 - core index']
  #allocation1 [shape = 'u32[72,128]{1,0:T(1,128)}', space=vmem, size = 0x9000, scoped, tag = 'internal scratch']
  %s0 = inlined_call_operand.hbm [shape: bf16[2,4,32,128], index: 0, kind: input, shape index: {}]
  %s1 = inlined_call_operand.hbm [shape: s8[2,1,32,128], index: 1, kind: input, shape index: {}]
  %s2 = inlined_call_operand.vmem [shape: f32[2,12,128], index: 2, kind: output, shape index: {}]
  %s3 = sld [smem:[#allocation0]]
  $region53: #{tpu_custom_call.1} parent=0
    _
  %s5 = ssub.s32 1, %s3
  %s6 = scalar_select 0, %s5, %s3
  $region1: #{tpu_custom_call.1} parent=0
    #allocation2 [shape = 'u8[65536]{0}', space=vmem, size = 0x10000, scoped, tag = 'input window, operand 0']
    #allocation3 [shape = 's32[2]{0}', space=sflag, size = 0x8, scoped, tag = 'scoped memory for tpu_custom_call.1']
    #allocation4 [shape = 'u8[8192]{0}', space=vmem, size = 0x2000, scoped, tag = 'input window, operand 1']
    #allocation5 [shape = 's32[2]{0}', space=sflag, size = 0x8, scoped, tag = 'scoped memory for tpu_custom_call.1']
    %7 = vsyncpa [#allocation3], 0
    %s8 = scalar_lea.sflag [#allocation3], 1
    %9 = vsyncpa %s8, 0
    %10 = vsyncpa [#allocation5], 0
    %s11 = scalar_lea.sflag [#allocation5], 1
    %12 = vsyncpa %s11, 0
    loop: start=0, step=1, limit=4
    $region2: #{tpu_custom_call.1} parent=1 // loop_pre_header
      _
    $region3: #{tpu_custom_call.1} parent=1 // loop_header
      %s14 = sphi 0, %s18
      %p15 = scmp.ge.s32.totalorder %s14, 4
      %s21 = sphi 0, %s33
      %s22 = sphi 0, %s29
      %s23 = sphi 0, %s21
      %s24 = sphi 0, %s22
      %s25 = sphi 0, %s23
      %s26 = sphi 0, %s24
      %s38 = sphi 0, %s40
      %s41 = sphi 0, %s38
      %s42 = sphi 0, %s41
      %s58 = sphi 0, %s42
      %s66 = sphi 0, %s68
      %s69 = sphi 0, %s66
      %s70 = sphi 0, %s69
      %s86 = sphi 0, %s70
      %s92 = sphi 0, %s94
      %s95 = sphi 0, %s92
      %s96 = sphi 0, %s95
      %s112 = sphi 0, %s96
    $region4: #{tpu_custom_call.1} parent=1 // loop_header_branch
      %17 = sbr.rel (%p15) target = $region8
    $region5: #{tpu_custom_call.1} parent=1 // loop_body
      %s19 = ssub.s32 %s14, 1
      %s20 = ssub.s32 %s14, 2
      %s27 = sadd.s32 1, %s22
      %p28 = scmp.ge.s32.totalorder %s27, 1
      %s29 = scalar_select %p28, 0, %s27
      %s30 = sadd.s32 1, %s21
      %s31 = scalar_select %p28, %s30, %s21
      %p32 = scmp.ge.s32.totalorder %s31, 2
      %s33 = scalar_select %p32, 0, %s31
      %s34 = ssub.s32 %s21, %s33
      %s35 = ssub.s32 %s22, %s29
      %s36 = sor.u32 %s34, %s35
      %p37 = scmp.eq.s32.totalorder %s36, 0
      %s39 = sadd.s32 %s38, 1
      %s40 = scalar_select %p37, %s38, %s39
      %p43 = pneg %p37
      %p44 = scmp.eq.s32.totalorder %s14, 1
      %p45 = por %p43, %p44
      %p46 = scmp.ne.s32.totalorder %s38, %s41
      %p47 = scmp.eq.s32.totalorder %s14, 0
      %p48 = por %p46, %p47
      %p49 = scmp.ne.s32.totalorder %s38, %s41
      %p50 = scmp.eq.s32.totalorder %s19, 1
      %p51 = por %p49, %p50
      %p52 = scmp.ne.s32.totalorder %s41, %s42
      %p53 = scmp.eq.s32.totalorder %s19, 0
      %p54 = por %p52, %p53
      %p55 = scmp.ne.s32.totalorder %s41, %s42
      %p56 = scmp.eq.s32.totalorder %s20, 1
      %p57 = por %p55, %p56
      %p59 = scmp.ne.s32.totalorder %s42, %s58
      %p60 = scmp.eq.s32.totalorder %s20, 0
      %p61 = por %p59, %p60
      %s62 = ssub.s32 %s21, %s33
      %s63 = ssub.s32 %s22, %s29
      %s64 = sor.u32 %s62, %s63
      %p65 = scmp.eq.s32.totalorder %s64, 0
      %s67 = sadd.s32 %s66, 1
      %s68 = scalar_select %p65, %s66, %s67
      %p71 = pneg %p65
      %p72 = scmp.eq.s32.totalorder %s14, 1
      %p73 = por %p71, %p72
      %p74 = scmp.ne.s32.totalorder %s66, %s69
      %p75 = scmp.eq.s32.totalorder %s14, 0
      %p76 = por %p74, %p75
      %p77 = scmp.ne.s32.totalorder %s66, %s69
      %p78 = scmp.eq.s32.totalorder %s19, 1
      %p79 = por %p77, %p78
      %p80 = scmp.ne.s32.totalorder %s69, %s70
      %p81 = scmp.eq.s32.totalorder %s19, 0
      %p82 = por %p80, %p81
      %p83 = scmp.ne.s32.totalorder %s69, %s70
      %p84 = scmp.eq.s32.totalorder %s20, 1
      %p85 = por %p83, %p84
      %p87 = scmp.ne.s32.totalorder %s70, %s86
      %p88 = scmp.eq.s32.totalorder %s20, 0
      %p89 = por %p87, %p88
      %s90 = ssub.s32 %s21, %s33
      %p91 = scmp.eq.s32.totalorder %s90, 0
      %s93 = sadd.s32 %s92, 1
      %s94 = scalar_select %p91, %s92, %s93
      %p97 = pneg %p91
      %p98 = scmp.eq.s32.totalorder %s14, 1
      %p99 = por %p97, %p98
      %p100 = scmp.ne.s32.totalorder %s92, %s95
      %p101 = scmp.eq.s32.totalorder %s14, 0
      %p102 = por %p100, %p101
      %p103 = scmp.ne.s32.totalorder %s92, %s95
      %p104 = scmp.eq.s32.totalorder %s19, 1
      %p105 = por %p103, %p104
      %p106 = scmp.ne.s32.totalorder %s95, %s96
      %p107 = scmp.eq.s32.totalorder %s19, 0
      %p108 = por %p106, %p107
      %p109 = scmp.ne.s32.totalorder %s95, %s96
      %p110 = scmp.eq.s32.totalorder %s20, 1
      %p111 = por %p109, %p110
      %p113 = scmp.ne.s32.totalorder %s96, %s112
      %p114 = scmp.eq.s32.totalorder %s20, 0
      %p115 = por %p113, %p114
      %p116 = scmp.le.s32.totalorder 1, %s14
      %p117 = scmp.lt.s32.totalorder %s14, 3
      %p118 = pnand %p116, %p117
      %p119 = pneg %p118
      // Predicated region
      $region9: #{tpu_custom_call.1} parent=5 // pred_check
        _
      $region10: #{tpu_custom_call.1} parent=5 // pred_check_branch
        %121 = sbr.rel (%p118) target = $region12
      $region11: #{tpu_custom_call.1} parent=5 // pred_region
        %s122 = ssub.s32 %s14, 1
      $region12: #{tpu_custom_call.1} parent=5 // pred_fallthru
        _
      %p123 = scmp.lt.s32.totalorder %s14, 2
      // Predicated region
      $region13: #{tpu_custom_call.1} parent=5 // pred_check
        %p124 = pneg %p123
      $region14: #{tpu_custom_call.1} parent=5 // pred_check_branch
        %126 = sbr.rel (%p124) target = $region16
      $region15: #{tpu_custom_call.1} parent=5 // pred_region
        // Predicated region
        $region17: #{tpu_custom_call.1} parent=15 // pred_check
          %p127 = pneg %p48
        $region18: #{tpu_custom_call.1} parent=15 // pred_check_branch
          %129 = sbr.rel (%p127) target = $region20
        $region19: #{tpu_custom_call.1} parent=15 // pred_region
          %s130 = sand.u32 %s38, 1
          %s131 = scalar_lea.sflag [#allocation3], %s130
          %s132 = sand.u32 %s38, 1
          %s133 = smul.addr %s132, 64
          %s134 = scalar_lea.vmem [#allocation2], %s133
          %s135 = smul.u32 4, %s22
          %137 = vsyncadd %s131, 0
          %s138 = smul.addr %s21, 16
          %s139 = sadd.s32 %s135, %s138
          %s140 = smul.addr %s139, 4
          %s141 = scalar_lea.hbm %s0, %s140
          %s142 = sshll.u32 %s141, 4
          %s143 = int_to_ptr.hbm [resolvable:$true] %s142
          %s144 = sshll.u32 %s134, 4
          %s145 = int_to_ptr.vmem [resolvable:$true] %s144
          %150 = dma.hbm_to_vmem [thread:$0]  %s143, 1024, %s145, %s131, 64, 64, 4
        $region20: #{tpu_custom_call.1} parent=15 // pred_fallthru
          _
        // Predicated region
        $region21: #{tpu_custom_call.1} parent=15 // pred_check
          %p151 = pneg %p76
        $region22: #{tpu_custom_call.1} parent=15 // pred_check_branch
          %153 = sbr.rel (%p151) target = $region24
        $region23: #{tpu_custom_call.1} parent=15 // pred_region
          %s154 = sand.u32 %s66, 1
          %s155 = scalar_lea.sflag [#allocation5], %s154
          %s156 = sand.u32 %s66, 1
          %s157 = smul.addr %s156, 8
          %s158 = scalar_lea.vmem [#allocation4], %s157
          %160 = vsyncadd %s155, 0
          %s161 = sadd.s32 %s22, %s21
          %s162 = smul.addr %s161, 8
          %s163 = scalar_lea.hbm %s1, %s162
          %s165 = sshll.u32 %s163, 4
          %s166 = int_to_ptr.hbm [resolvable:$true] %s165
          %s167 = sshll.u32 %s158, 4
          %s168 = int_to_ptr.vmem [resolvable:$true] %s167
          %170 = dma.hbm_to_vmem [thread:$0]  %s166, 128, %s168, %s155
        $region24: #{tpu_custom_call.1} parent=15 // pred_fallthru
          _
      $region16: #{tpu_custom_call.1} parent=5 // pred_fallthru
        _
      %p171 = scmp.le.s32.totalorder 1, %s14
      %p172 = scmp.lt.s32.totalorder %s14, 3
      %p173 = pnand %p171, %p172
      %p174 = pneg %p173
      // Predicated region
      $region25: #{tpu_custom_call.1} parent=5 // pred_check
        _
      $region26: #{tpu_custom_call.1} parent=5 // pred_check_branch
        %176 = sbr.rel (%p173) target = $region28
      $region27: #{tpu_custom_call.1} parent=5 // pred_region
        %s177 = ssub.s32 %s14, 1
        %s178 = sand.u32 %s41, 1
        %s179 = scalar_lea.sflag [#allocation3], %s178
        %s180 = sand.u32 %s41, 1
        %s181 = smul.addr %s180, 64
        %s182 = scalar_lea.vmem [#allocation2], %s181
        // Predicated region
        $region29: #{tpu_custom_call.1} parent=27 // pred_check
          %p183 = pneg %p54
        $region30: #{tpu_custom_call.1} parent=27 // pred_check_branch
          %185 = sbr.rel (%p183) target = $region32
        $region31: #{tpu_custom_call.1} parent=27 // pred_region
          %187 = dma.done %s179, 1024
        $region32: #{tpu_custom_call.1} parent=27 // pred_fallthru
          _
        %s188 = sand.u32 %s69, 1
        %s189 = scalar_lea.sflag [#allocation5], %s188
        %s190 = sand.u32 %s69, 1
        %s191 = smul.addr %s190, 8
        %s192 = scalar_lea.vmem [#allocation4], %s191
        // Predicated region
        $region33: #{tpu_custom_call.1} parent=27 // pred_check
          %p193 = pneg %p82
        $region34: #{tpu_custom_call.1} parent=27 // pred_check_branch
          %195 = sbr.rel (%p193) target = $region36
        $region35: #{tpu_custom_call.1} parent=27 // pred_region
          %197 = dma.done %s189, 128
        $region36: #{tpu_custom_call.1} parent=27 // pred_fallthru
          _
        %s198 = sand.u32 %s41, 1
        %s199 = scalar_lea.sflag [#allocation3], %s198
        %s200 = sand.u32 %s41, 1
        %s201 = smul.addr %s200, 64
        %s202 = scalar_lea.vmem [#allocation2], %s201
        %p203 = pneg %p54
        %p204 = pneg %p51
        %s205 = sand.u32 %s69, 1
        %s206 = scalar_lea.sflag [#allocation5], %s205
        %s207 = sand.u32 %s69, 1
        %s208 = smul.addr %s207, 8
        %s209 = scalar_lea.vmem [#allocation4], %s208
        %p210 = pneg %p82
        %p211 = pneg %p79
        %p212 = pneg %p108
        %p213 = pneg %p105
        %p214 = scmp.lt.s32.totalorder %s23, 1
        %s215 = scalar_select %p214, %s23, 1
        %s216 = smul.addr %s215, 2
        %s217 = smul.addr %s216, 8
        %s218 = scalar_lea.vmem %s2, %s217
        %s219 = smul.u32 4, %s24
        %p220 = scmp.lt.s32.totalorder %s23, 1
        %s221 = scalar_select %p220, %s23, 1
        %s222 = smul.addr %s221, 2
        %s223 = smul.addr %s222, 8
        %s224 = scalar_lea.vmem %s2, %s223
        %p225 = scmp.eq.s32.totalorder %s24, 0
        // Predicated region
        $region37: #{tpu_custom_call.1} parent=27 // pred_check
          %p226 = pneg %p225
        $region38: #{tpu_custom_call.1} parent=27 // pred_check_branch
          %228 = sbr.rel (%p226) target = $region40
        $region39: #{tpu_custom_call.1} parent=27 // pred_region
          %229 = vst [vmem:[%s224] sm:$0xff] 0.0
          %230 = vst [vmem:[%s224 + $0x8] sm:$0xf] 0.0
        $region40: #{tpu_custom_call.1} parent=27 // pred_fallthru
          _
        %v231 = vld [vmem:[%s192] sm:$0xff]
        %v232 = vunpack.c.0.s8 %v231
        %v233 = vunpack.c.1.s8 %v231
        %v234 = vunpack.c.2.s8 %v231
        %v235 = vunpack.c.3.s8 %v231
        %v236 = vld [vmem:[%s182] sm:$0xf]
        %v237 = vld [vmem:[%s182 + $0x4] sm:$0xf]
        %v238 = vld [vmem:[%s182 + $0x8] sm:$0xf]
        %v239 = vld [vmem:[%s182 + $0xc] sm:$0xf]
        %v240 = vunpack.c.l.bf16 %v236
        %v241 = vunpack.c.l.bf16 %v237
        %v242 = vunpack.c.l.bf16 %v238
        %v243 = vunpack.c.l.bf16 %v239
        %vm244 = vcmp.eq.s32.totalorder %v232, 0
        %vm245 = vcmp.eq.s32.totalorder %v233, 0
        %vm246 = vcmp.eq.s32.totalorder %v234, 0
        %vm247 = vcmp.eq.s32.totalorder %v235, 0
        %v248 = vsel %vm244, %v240, 0.0
        %v249 = vsel %vm245, %v241, 0.0
        %v250 = vsel %vm246, %v242, 0.0
        %v251 = vsel %vm247, %v243, 0.0
        %v252 = vadd.f32 %v248, %v249
        %v253 = vadd.f32 %v252, %v250
        %v254 = vadd.f32 %v253, %v251
        %v255 = vrot.slane %v254, 4
        %v256 = vadd.f32 %v254, %v255
        %v257 = vrot.slane %v256, 2
        %v258 = vadd.f32 %v256, %v257
        %v259 = vrot.slane %v258, 1
        %v260 = vadd.f32 %v258, %v259
        %v261 = vsel %vm244, 1, 0
        %v262 = vsel %vm245, 1, 0
        %v263 = vsel %vm246, 1, 0
        %v264 = vsel %vm247, 1, 0
        %v265 = vcvt.s32.f32 %v261
        %v266 = vcvt.s32.f32 %v262
        %v267 = vcvt.s32.f32 %v263
        %v268 = vcvt.s32.f32 %v264
        %v269 = vadd.f32 %v265, %v266
        %v270 = vadd.f32 %v269, %v267
        %v271 = vadd.f32 %v270, %v268
        %v272 = vrot.slane %v271, 4
        %v273 = vadd.f32 %v271, %v272
        %v274 = vrot.slane %v273, 2
        %v275 = vadd.f32 %v273, %v274
        %v276 = vrot.slane %v275, 1
        %v277 = vadd.f32 %v275, %v276
        %v278 = vmul.f32 %v240, %v240
        %v279 = vmul.f32 %v241, %v241
        %v280 = vmul.f32 %v242, %v242
        %v281 = vmul.f32 %v243, %v243
        %v282 = vadd.f32 %v278, %v279
        %v283 = vadd.f32 %v282, %v280
        %v284 = vadd.f32 %v283, %v281
        %v285 = vrot.slane %v284, 4
        %v286 = vadd.f32 %v284, %v285
        %v287 = vrot.slane %v286, 2
        %v288 = vadd.f32 %v286, %v287
        %v289 = vrot.slane %v288, 1
        %v290 = vadd.f32 %v288, %v289
        %s291 = scalar_lea.vmem %s182, 16 [#allocation2]
        %v292 = vld [vmem:[%s291] sm:$0xf]
        %v293 = vld [vmem:[%s291 + $0x4] sm:$0xf]
        %v294 = vld [vmem:[%s291 + $0x8] sm:$0xf]
        %v295 = vld [vmem:[%s291 + $0xc] sm:$0xf]
        %v296 = vunpack.c.l.bf16 %v292
        %v297 = vunpack.c.l.bf16 %v293
        %v298 = vunpack.c.l.bf16 %v294
        %v299 = vunpack.c.l.bf16 %v295
        %vm300 = vcmp.eq.s32.totalorder %v232, 1
        %vm301 = vcmp.eq.s32.totalorder %v233, 1
        %vm302 = vcmp.eq.s32.totalorder %v234, 1
        %vm303 = vcmp.eq.s32.totalorder %v235, 1
        %v304 = vsel %vm300, %v296, 0.0
        %v305 = vsel %vm301, %v297, 0.0
        %v306 = vsel %vm302, %v298, 0.0
        %v307 = vsel %vm303, %v299, 0.0
        %v308 = vadd.f32 %v304, %v305
        %v309 = vadd.f32 %v308, %v306
        %v310 = vadd.f32 %v309, %v307
        %v311 = vrot.slane %v310, 4
        %v312 = vadd.f32 %v310, %v311
        %v313 = vrot.slane %v312, 2
        %v314 = vadd.f32 %v312, %v313
        %v315 = vrot.slane %v314, 1
        %v316 = vadd.f32 %v314, %v315
        %v317 = vsel %vm300, 1, 0
        %v318 = vsel %vm301, 1, 0
        %v319 = vsel %vm302, 1, 0
        %v320 = vsel %vm303, 1, 0
        %v321 = vcvt.s32.f32 %v317
        %v322 = vcvt.s32.f32 %v318
        %v323 = vcvt.s32.f32 %v319
        %v324 = vcvt.s32.f32 %v320
        %v325 = vadd.f32 %v321, %v322
        %v326 = vadd.f32 %v325, %v323
        %v327 = vadd.f32 %v326, %v324
        %v328 = vrot.slane %v327, 4
        %v329 = vadd.f32 %v327, %v328
        %v330 = vrot.slane %v329, 2
        %v331 = vadd.f32 %v329, %v330
        %v332 = vrot.slane %v331, 1
        %v333 = vadd.f32 %v331, %v332
        %v334 = vmul.f32 %v296, %v296
        %v335 = vmul.f32 %v297, %v297
        %v336 = vmul.f32 %v298, %v298
        %v337 = vmul.f32 %v299, %v299
        %v338 = vadd.f32 %v334, %v335
        %v339 = vadd.f32 %v338, %v336
        %v340 = vadd.f32 %v339, %v337
        %v341 = vrot.slane %v340, 4
        %v342 = vadd.f32 %v340, %v341
        %v343 = vrot.slane %v342, 2
        %v344 = vadd.f32 %v342, %v343
        %v345 = vrot.slane %v344, 1
        %v346 = vadd.f32 %v344, %v345
        %s347 = scalar_lea.vmem %s182, 32 [#allocation2]
        %v348 = vld [vmem:[%s347] sm:$0xf]
        %v349 = vld [vmem:[%s347 + $0x4] sm:$0xf]
        %v350 = vld [vmem:[%s347 + $0x8] sm:$0xf]
        %v351 = vld [vmem:[%s347 + $0xc] sm:$0xf]
        %v352 = vunpack.c.l.bf16 %v348
        %v353 = vunpack.c.l.bf16 %v349
        %v354 = vunpack.c.l.bf16 %v350
        %v355 = vunpack.c.l.bf16 %v351
        %vm356 = vcmp.eq.s32.totalorder %v232, 2
        %vm357 = vcmp.eq.s32.totalorder %v233, 2
        %vm358 = vcmp.eq.s32.totalorder %v234, 2
        %vm359 = vcmp.eq.s32.totalorder %v235, 2
        %v360 = vsel %vm356, %v352, 0.0
        %v361 = vsel %vm357, %v353, 0.0
        %v362 = vsel %vm358, %v354, 0.0
        %v363 = vsel %vm359, %v355, 0.0
        %v364 = vadd.f32 %v360, %v361
        %v365 = vadd.f32 %v364, %v362
        %v366 = vadd.f32 %v365, %v363
        %v367 = vrot.slane %v366, 4
        %v368 = vadd.f32 %v366, %v367
        %v369 = vrot.slane %v368, 2
        %v370 = vadd.f32 %v368, %v369
        %v371 = vrot.slane %v370, 1
        %v372 = vadd.f32 %v370, %v371
        %v373 = vsel %vm356, 1, 0
        %v374 = vsel %vm357, 1, 0
        %v375 = vsel %vm358, 1, 0
        %v376 = vsel %vm359, 1, 0
        %v377 = vcvt.s32.f32 %v373
        %v378 = vcvt.s32.f32 %v374
        %v379 = vcvt.s32.f32 %v375
        %v380 = vcvt.s32.f32 %v376
        %v381 = vadd.f32 %v377, %v378
        %v382 = vadd.f32 %v381, %v379
        %v383 = vadd.f32 %v382, %v380
        %v384 = vrot.slane %v383, 4
        %v385 = vadd.f32 %v383, %v384
        %v386 = vrot.slane %v385, 2
        %v387 = vadd.f32 %v385, %v386
        %v388 = vrot.slane %v387, 1
        %v389 = vadd.f32 %v387, %v388
        %v390 = vmul.f32 %v352, %v352
        %v391 = vmul.f32 %v353, %v353
        %v392 = vmul.f32 %v354, %v354
        %v393 = vmul.f32 %v355, %v355
        %v394 = vadd.f32 %v390, %v391
        %v395 = vadd.f32 %v394, %v392
        %v396 = vadd.f32 %v395, %v393
        %v397 = vrot.slane %v396, 4
        %v398 = vadd.f32 %v396, %v397
        %v399 = vrot.slane %v398, 2
        %v400 = vadd.f32 %v398, %v399
        %v401 = vrot.slane %v400, 1
        %v402 = vadd.f32 %v400, %v401
        %s403 = scalar_lea.vmem %s182, 48 [#allocation2]
        %v404 = vld [vmem:[%s403] sm:$0xf]
        %v405 = vld [vmem:[%s403 + $0x4] sm:$0xf]
        %v406 = vld [vmem:[%s403 + $0x8] sm:$0xf]
        %v407 = vld [vmem:[%s403 + $0xc] sm:$0xf]
        %v408 = vunpack.c.l.bf16 %v404
        %v409 = vunpack.c.l.bf16 %v405
        %v410 = vunpack.c.l.bf16 %v406
        %v411 = vunpack.c.l.bf16 %v407
        %vm412 = vcmp.eq.s32.totalorder %v232, 3
        %vm413 = vcmp.eq.s32.totalorder %v233, 3
        %vm414 = vcmp.eq.s32.totalorder %v234, 3
        %vm415 = vcmp.eq.s32.totalorder %v235, 3
        %v416 = vsel %vm412, %v408, 0.0
        %v417 = vsel %vm413, %v409, 0.0
        %v418 = vsel %vm414, %v410, 0.0
        %v419 = vsel %vm415, %v411, 0.0
        %v420 = vadd.f32 %v416, %v417
        %v421 = vadd.f32 %v420, %v418
        %v422 = vadd.f32 %v421, %v419
        %v423 = vrot.slane %v422, 4
        %v424 = vadd.f32 %v422, %v423
        %v425 = vrot.slane %v424, 2
        %v426 = vadd.f32 %v424, %v425
        %v427 = vrot.slane %v426, 1
        %v428 = vadd.f32 %v426, %v427
        %v429 = vsel %vm412, 1, 0
        %v430 = vsel %vm413, 1, 0
        %v431 = vsel %vm414, 1, 0
        %v432 = vsel %vm415, 1, 0
        %v433 = vcvt.s32.f32 %v429
        %v434 = vcvt.s32.f32 %v430
        %v435 = vcvt.s32.f32 %v431
        %v436 = vcvt.s32.f32 %v432
        %v437 = vadd.f32 %v433, %v434
        %v438 = vadd.f32 %v437, %v435
        %v439 = vadd.f32 %v438, %v436
        %v440 = vrot.slane %v439, 4
        %v441 = vadd.f32 %v439, %v440
        %v442 = vrot.slane %v441, 2
        %v443 = vadd.f32 %v441, %v442
        %v444 = vrot.slane %v443, 1
        %v445 = vadd.f32 %v443, %v444
        %v446 = vmul.f32 %v408, %v408
        %v447 = vmul.f32 %v409, %v409
        %v448 = vmul.f32 %v410, %v410
        %v449 = vmul.f32 %v411, %v411
        %v450 = vadd.f32 %v446, %v447
        %v451 = vadd.f32 %v450, %v448
        %v452 = vadd.f32 %v451, %v449
        %v453 = vrot.slane %v452, 4
        %v454 = vadd.f32 %v452, %v453
        %v455 = vrot.slane %v454, 2
        %v456 = vadd.f32 %v454, %v455
        %v457 = vrot.slane %v456, 1
        %v458 = vadd.f32 %v456, %v457
        %v459 = vld [vmem:[%s224] sm:$0xff]
        %v460 = vld [vmem:[%s224 + $0x8] sm:$0xf]
        %vm461 = vcmask 1040384
        %v462 = vsel %vm461, %v260, %v277
        %vm463 = vcmask 1041408
        %v464 = vsel %vm463, %v462, %v290
        %vm465 = vcmask 1042432
        %v466 = vsel %vm465, %v464, %v316
        %vm467 = vcmask 1043456
        %v468 = vsel %vm467, %v466, %v333
        %vm469 = vcmask 1044480
        %v470 = vsel %vm469, %v468, %v346
        %vm471 = vcmask 1045504
        %v472 = vsel %vm471, %v470, %v372
        %vm473 = vcmask 1046528
        %v474 = vsel %vm473, %v472, %v389
        %v475 = vsel %vm461, %v402, %v428
        %v476 = vsel %vm463, %v475, %v445
        %v477 = vsel %vm465, %v476, %v458
        %v478 = vadd.f32 %v459, %v474
        %v479 = vadd.f32 %v460, %v477
        %480 = vst [vmem:[%s224] sm:$0xff] %v478
        %481 = vst [vmem:[%s224 + $0x8] sm:$0xf] %v479
        %p482 = scmp.lt.s32.totalorder %s23, 1
        %s483 = scalar_select %p482, %s23, 1
        %s484 = smul.addr %s483, 2
        %s485 = smul.addr %s484, 8
        %s486 = scalar_lea.vmem %s2, %s485
        // Predicated region
        $region41: #{tpu_custom_call.1} parent=27 // pred_check
          %p487 = pneg %p105
        $region42: #{tpu_custom_call.1} parent=27 // pred_check_branch
          %489 = sbr.rel (%p487) target = $region44
        $region43: #{tpu_custom_call.1} parent=27 // pred_region
          _
        $region44: #{tpu_custom_call.1} parent=27 // pred_fallthru
          _
      $region28: #{tpu_custom_call.1} parent=5 // pred_fallthru
        _
      %p490 = scmp.le.s32.totalorder 2, %s14
      // Predicated region
      $region45: #{tpu_custom_call.1} parent=5 // pred_check
        %p491 = pneg %p490
      $region46: #{tpu_custom_call.1} parent=5 // pred_check_branch
        %493 = sbr.rel (%p491) target = $region48
      $region47: #{tpu_custom_call.1} parent=5 // pred_region
        %s494 = ssub.s32 %s14, 2
        // Predicated region
        $region49: #{tpu_custom_call.1} parent=47 // pred_check
          %p495 = pneg %p111
        $region50: #{tpu_custom_call.1} parent=47 // pred_check_branch
          %497 = sbr.rel (%p495) target = $region52
        $region51: #{tpu_custom_call.1} parent=47 // pred_region
          %p498 = scmp.lt.s32.totalorder %s25, 1
          %s499 = scalar_select %p498, %s25, 1
          %s500 = smul.addr %s499, 2
          %s501 = smul.addr %s500, 8
          %s502 = scalar_lea.vmem %s2, %s501
        $region52: #{tpu_custom_call.1} parent=47 // pred_fallthru
          _
      $region48: #{tpu_custom_call.1} parent=5 // pred_fallthru
        _
    $region6: #{tpu_custom_call.1} parent=1 // loop_footer
      %s18 = sadd.s32 1, %s14
    $region7: #{tpu_custom_call.1} parent=1 // loop_footer_branch
      %13 = sbr.rel target = $region3
    $region8: #{tpu_custom_call.1} parent=1 // loop_exit
      _
    %503 = vsyncpa [#allocation3], 1
    %s504 = scalar_lea.sflag [#allocation3], 1
    %505 = vsyncpa %s504, 1
    %506 = vsyncpa [#allocation5], 1
    %s507 = scalar_lea.sflag [#allocation5], 1
    %508 = vsyncpa %s507, 1

</llo_original>
